<compile_context>
chip_gen: v7x
topology: tpu7x:2x2x1
jax: 0.10.0
libtpu: 0.0.40
codegen_flags: <defaults>
</compile_context>

<pallas_src>
import functools
import math

import numpy as np
import jax
import jax.numpy as jnp
from jax.experimental import pallas as pl
from jax.experimental.pallas import tpu as pltpu


# ----------------------------- config ("args") -----------------------------
class Args:
    graph_fusion_dim = 64      # feature dim of a / v / l nodes
    dropout = 0.1
    use_residue = False
    use_speaker = True
    use_modal = True
    use_huge_adj = False
    use_know_graph = True
    text_and_know = 'all'      # -> graph_net uses the (mutated) big adjacency `adj`
    only_text = False
    use_density = False        # -> sub_adj = sim_matrix (no density / s_mask multiply)
    know_fusion_att = 'all'
    know_fusion_num = 5


def _round_up(x, m):
    return (x + m - 1) // m * m


_PI = np.float32(np.pi)
_INV_PI = np.float32(1.0 / np.pi)


# ----------------------------- in-kernel helpers ----------------------------
def _acos(x):
    """acos(x) for x in [-1, 1]: Abramowitz & Stegun 4.4.46 polynomial, |err| <= 2e-8 rad.
    (torch.acos has no reliable Mosaic lowering; this runs on VPU mul/add + one sqrt.)"""
    ax = jnp.abs(x)
    p = jnp.float32(-0.0012624911)
    for c in (0.0066700901, -0.0170881256, 0.0308918810, -0.0501743046,
              0.0889789874, -0.2145988016, 1.5707963050):
        p = p * ax + jnp.float32(c)
    r = jnp.sqrt(jnp.maximum(1.0 - ax, 0.0)) * p
    return jnp.where(x < 0.0, _PI - r, r)


def _assemble_rows(ids_row, ids_col, xn_rows, xn_all):
    """Raw (pre-normalization, pre-mutation) big-adjacency rows for one row block, plus the
    structural 'keep' mask that reproduces create_big_adj's in-place edits on `adj`."""
    # cosine Gram tile on the MXU (K = graph_fusion_dim); f32 operands / f32 accumulation
    cos = jax.lax.dot_general(xn_rows, xn_all, (((1,), (1,)), ((), ())),
                              preferred_element_type=jnp.float32)
    seg_r, mod_r, pos_r = ids_row[:, 0:1], ids_row[:, 1:2], ids_row[:, 2:3]
    seg_c, mod_c, pos_c = ids_col[0:1, :], ids_col[1:2, :], ids_col[2:3, :]
    same_mod = mod_r == mod_c
    same_pos = pos_r == pos_c
    same_node = same_mod & same_pos          # identical stacked node (exact self-similarity)
    cos = jnp.where(same_node, 1.0, cos)
    s = _acos(jnp.clip(jnp.float32(0.99999) * cos, -1.0, 1.0)) * _INV_PI
    # same-modality blocks: within-dialogue pairs use acos/pi
    msame = same_mod & (seg_r == seg_c)
    # cross-modality blocks: same-utterance diagonal uses 1 - acos/pi
    mcross = jnp.logical_not(same_mod) & same_pos
    A = jnp.where(msame, s, 0.0) + jnp.where(mcross, 1.0 - s, 0.0)
    # post-normalization mutation mask: aa & vv keep only their diagonal; a-v/a-l/v-a/v-l
    # blocks zeroed; all l-rows untouched.
    keep = (mod_r == 2) | same_node
    return A, keep


# ------------------------------- Pallas kernels ------------------------------
def _prep_kernel(a_ref, v_ref, l_ref, spk_ref, memb_ref, w_ref, xn_ref, xw_ref,
                 *, n, mp, d, hp):
    """Embedding adds, row-normalized stacked features xn, and hoisted XW = feats @ W."""
    memb = memb_ref[...]
    w = w_ref[...]
    mods = (a_ref[...] + memb[0:1, :],                       # a += modal_emb[0]
            v_ref[...] + memb[1:2, :],                       # v += modal_emb[1]
            l_ref[...] + spk_ref[...] + memb[2:3, :])        # l += spk_emb ; l += modal_emb[2]
    for j, x in enumerate(mods):
        inv = jax.lax.rsqrt(jnp.sum(x * x, axis=1, keepdims=True) + 1e-12)   # EUP rsqrt
        xn_ref[j * n:(j + 1) * n, :] = x * inv
        xw_ref[j * n:(j + 1) * n, :] = jnp.dot(
            x, w, preferred_element_type=jnp.float32).astype(jnp.bfloat16)
    if mp > 3 * n:  # zero padded rows so they contribute nothing downstream
        xn_ref[3 * n:, :] = jnp.zeros((mp - 3 * n, d), jnp.float32)
        xw_ref[3 * n:, :] = jnp.zeros((mp - 3 * n, hp), jnp.bfloat16)


def _dinv_kernel(ids_row_ref, ids_col_ref, xn_blk_ref, xn_all_ref, dinv_ref):
    """Row-tiled degree pass: d = adj.sum(1) of the raw adjacency, output D^-1/2 entries."""
    A, _ = _assemble_rows(ids_row_ref[...], ids_col_ref[...],
                          xn_blk_ref[...], xn_all_ref[...])
    dinv_ref[...] = jax.lax.rsqrt(jnp.sum(A, axis=1, keepdims=True) + 1e-12)


def _adj_gcn_kernel(ids_row_ref, dinv_blk_ref, ids_col_ref, dinv_all_ref,
                    xn_blk_ref, xn_all_ref, xw_ref, b_ref, h_ref):
    """Fused: rebuild adjacency rows, D^-1/2 A D^-1/2, mutation mask, A_block @ XW, ReLU."""
    A, keep = _assemble_rows(ids_row_ref[...], ids_col_ref[...],
                             xn_blk_ref[...], xn_all_ref[...])
    adjn = jnp.where(keep, A * dinv_blk_ref[...] * dinv_all_ref[...], 0.0)
    xw = xw_ref[...]                                          # (Mp, Hp) bf16, resident
    # TODO(synk): GCNII_lyc source is not provided; stand-in propagation ReLU(A @ X @ W + b).
    h = jnp.dot(adjn.astype(xw.dtype), xw, preferred_element_type=jnp.float32)
    h_ref[...] = jnp.maximum(h + b_ref[...], 0.0)


# ------------------------------- forward wrapper -----------------------------
def mm_gcn_forward(params, args, a, v, l, dia_len, qmask,
                   global_sdj_den, front_sdj_den, back_sdj_den, s_mask,
                   k1_0, k2_0, k3_0, k4_0, features_k1, features_k2, features_k3,
                   nhidden):
    # TODO(synk): global/front/back_sdj_den, s_mask, k*_0, features_k* are consumed only
    #             inside GCNII_lyc (source not provided); accepted for signature fidelity.
    N, D = l.shape
    M = 3 * N
    TM = 256 if M >= 256 else _round_up(M, 8)       # row tile (256 rows at realistic sizes)
    Mp = _round_up(M, TM)
    G = Mp // TM
    nh = nhidden
    Hp = _round_up(max(nh, 128), 128)               # lane-dense padded hidden width

    # --- glue: speaker one-hot -> index -> embedding gather (matches torch add order) ---
    qm = jnp.concatenate([qmask[:dia_len[i], i, :] for i in range(len(dia_len))], axis=0)
    spk_emb = params['speaker_emb'][jnp.argmax(qm, axis=-1)]                 # (N, D)

    w_p = jnp.pad(params['gcn_w'], ((0, 0), (0, Hp - nh)))                   # (D, Hp)
    b_p = jnp.pad(params['gcn_b'], ((0, 0), (0, Hp - nh)))                   # (1, Hp)

    full = lambda shape: pl.BlockSpec(shape, lambda i: (0,) * len(shape))

    # --- kernel 1: embedding adds + normalized features + hoisted XW (small, one block) ---
    xn, xw = pl.pallas_call(
        functools.partial(_prep_kernel, n=N, mp=Mp, d=D, hp=Hp),
        grid=(1,),
        in_specs=[full((N, D)), full((N, D)), full((N, D)), full((N, D)),
                  full((3, D)), full((D, Hp))],
        out_specs=(full((Mp, D)), full((Mp, Hp))),
        out_shape=(jax.ShapeDtypeStruct((Mp, D), jnp.float32),
                   jax.ShapeDtypeStruct((Mp, Hp), jnp.bfloat16)),
        compiler_params=pltpu.CompilerParams(dimension_semantics=("arbitrary",)),
    )(a, v, l, spk_emb, params['modal_emb'], w_p)

    # --- per-node ids [segment, modality, position]: O(M) host work, replaces dense masks ---
    seg = np.concatenate([np.full((L,), i, np.int32) for i, L in enumerate(dia_len)])
    ids = np.stack([np.tile(seg, 3),
                    np.repeat(np.arange(3, dtype=np.int32), N),
                    np.tile(np.arange(N, dtype=np.int32), 3)], axis=1)       # (M, 3)
    if Mp > M:                      # sentinel ids: padded nodes never couple to real nodes
        ids = np.concatenate([ids, np.full((Mp - M, 3), -1, np.int32)], axis=0)
    ids_rows = jnp.asarray(ids)                     # (Mp, 3) int32
    ids_cols = jnp.asarray(ids.T.copy())            # (3, Mp) int32

    rowblk = lambda shape: pl.BlockSpec(shape, lambda i: (i, 0))
    resid = lambda shape: pl.BlockSpec(shape, lambda i: (0, 0))

    # --- kernel 2: row-tiled degree pass -> D^-1/2 vector (raw adjacency never stored) ---
    dinv = pl.pallas_call(
        _dinv_kernel,
        grid=(G,),
        in_specs=[rowblk((TM, 3)), resid((3, Mp)), rowblk((TM, D)), resid((Mp, D))],
        out_specs=rowblk((TM, 1)),
        out_shape=jax.ShapeDtypeStruct((Mp, 1), jnp.float32),
        compiler_params=pltpu.CompilerParams(
            dimension_semantics=("parallel",),
            vmem_limit_bytes=64 * 1024 * 1024),
    )(ids_rows, ids_cols, xn, xn)

    dinv_row = dinv.reshape(1, Mp)                  # column-side scaling vector (tiny)

    # --- kernel 3: fused adjacency assembly + normalization + mask + GCN propagation ---
    h = pl.pallas_call(
        _adj_gcn_kernel,
        grid=(G,),
        in_specs=[rowblk((TM, 3)), rowblk((TM, 1)), resid((3, Mp)), resid((1, Mp)),
                  rowblk((TM, D)), resid((Mp, D)), resid((Mp, Hp)), resid((1, Hp))],
        out_specs=rowblk((TM, Hp)),
        out_shape=jax.ShapeDtypeStruct((Mp, Hp), jnp.float32),
        compiler_params=pltpu.CompilerParams(
            dimension_semantics=("parallel",),
            vmem_limit_bytes=64 * 1024 * 1024),
    )(ids_rows, dinv, ids_cols, dinv_row, xn, xn, xw, b_p)

    # --- glue: drop padding, only_text=False -> concat the three modality slices ---
    h = h[:M, :nh]
    return jnp.concatenate([h[:N], h[N:2 * N], h[2 * N:3 * N]], axis=-1)   # (N, 3*nhidden)


# --------------------------- pure-JAX reference (validation) -------------------------
def mm_gcn_reference(params, a, v, l, dia_len, qmask, nhidden):
    N, D = l.shape
    M = 3 * N
    qm = jnp.concatenate([qmask[:dia_len[i], i, :] for i in range(len(dia_len))], axis=0)
    spk = params['speaker_emb'][jnp.argmax(qm, axis=-1)]
    a2 = a + params['modal_emb'][0]
    v2 = v + params['modal_emb'][1]
    l2 = l + spk + params['modal_emb'][2]
    feats = jnp.concatenate([a2, v2, l2], axis=0)
    xn = feats / jnp.sqrt(jnp.sum(feats * feats, axis=1, keepdims=True))
    cos = jnp.matmul(xn, xn.T, precision=jax.lax.Precision.HIGHEST)
    s = jnp.arccos(jnp.clip(jnp.float32(0.99999) * cos, -1.0, 1.0)) / np.pi
    # torch create_big_adj loops
    msame = np.zeros((M, M), bool)
    mcross = np.zeros((M, M), bool)
    start = 0
    for L in dia_len:
        for m in range(3):
            for nn in range(3):
                ms, ns = start + N * m, start + N * nn
                if m == nn:
                    msame[ms:ms + L, ns:ns + L] = True
                else:
                    mcross[np.arange(ms, ms + L), np.arange(ns, ns + L)] = True
        start += L
    A = jnp.where(jnp.asarray(msame), s, 0.0) + jnp.where(jnp.asarray(mcross), 1.0 - s, 0.0)
    d = jnp.sum(A, axis=1)
    dinv = d ** -0.5
    adj = A * dinv[:, None] * dinv[None, :]
    smask = np.ones((M, M), np.float32)             # in-place edits applied to `adj` in torch
    eyeN = np.eye(N, dtype=np.float32)
    smask[:N, :N] = eyeN
    smask[N:2 * N, N:2 * N] = eyeN
    smask[:N, N:2 * N] = 0.0
    smask[:N, 2 * N:] = 0.0
    smask[N:2 * N, :N] = 0.0
    smask[N:2 * N, 2 * N:] = 0.0
    adj = adj * jnp.asarray(smask)
    xw = jnp.matmul(feats, params['gcn_w'], precision=jax.lax.Precision.HIGHEST)
    h = jnp.maximum(jnp.matmul(adj, xw, precision=jax.lax.Precision.HIGHEST)
                    + params['gcn_b'], 0.0)
    return jnp.concatenate([h[:N], h[N:2 * N], h[2 * N:3 * N]], axis=-1)


# --------------------------------- parameter init ------------------------------------
def init_params(key, args, nhidden, n_speakers=2):
    D = args.graph_fusion_dim
    k1, k2, k3 = jax.random.split(key, 3)
    # (a_fc / v_fc / l_fc / feature_fc / final_fc are unused on this forward path.)
    return {
        'speaker_emb': jax.random.normal(k1, (n_speakers, D), jnp.float32) * 0.02,
        'modal_emb': jax.random.normal(k2, (3, D), jnp.float32) * 0.02,
        'gcn_w': jax.random.normal(k3, (D, nhidden), jnp.float32) / math.sqrt(D),
        'gcn_b': jnp.zeros((1, nhidden), jnp.float32),
    }


# -------------------------------------- main ------------------------------------------
if __name__ == "__main__":
    args = Args()
    nhidden = 32
    n_speakers = 2
    D = args.graph_fusion_dim
    dia_len = [4, 4]                 # two dialogues of 4 utterances
    N = sum(dia_len)                 # sum_seq = 8
    seq, batch = max(dia_len), len(dia_len)

    key = jax.random.PRNGKey(0)
    keys = jax.random.split(key, 16)
    params = init_params(keys[0], args, nhidden, n_speakers)

    a = jax.random.normal(keys[1], (N, D), jnp.float32)
    v = jax.random.normal(keys[2], (N, D), jnp.float32)
    l = jax.random.normal(keys[3], (N, D), jnp.float32)

    spk = jax.random.randint(keys[4], (seq, batch), 0, n_speakers)
    qmask = jax.nn.one_hot(spk, n_speakers, dtype=jnp.float32)              # (seq, batch, 2)

    global_sdj_den = jax.random.uniform(keys[5], (batch, seq, seq), jnp.float32)
    front_sdj_den = jax.random.uniform(keys[6], (batch, seq, seq), jnp.float32)
    back_sdj_den = jax.random.uniform(keys[7], (batch, seq, seq), jnp.float32)
    s_mask = (jax.random.uniform(keys[8], (batch, seq, seq)) > 0.5).astype(jnp.float32)
    k1_0 = jax.random.normal(keys[9], (N, D), jnp.float32)
    k2_0 = jax.random.normal(keys[10], (N, D), jnp.float32)
    k3_0 = jax.random.normal(keys[11], (N, D), jnp.float32)
    k4_0 = jax.random.normal(keys[12], (N, D), jnp.float32)
    features_k1 = jax.random.normal(keys[13], (N, D), jnp.float32)
    features_k2 = jax.random.normal(keys[14], (N, D), jnp.float32)
    features_k3 = jax.random.normal(keys[15], (N, D), jnp.float32)

    out = mm_gcn_forward(params, args, a, v, l, dia_len, qmask,
                         global_sdj_den, front_sdj_den, back_sdj_den, s_mask,
                         k1_0, k2_0, k3_0, k4_0,
                         features_k1, features_k2, features_k3, nhidden)
    out = jax.block_until_ready(out)
    assert out.shape == (N, 3 * nhidden), out.shape
    assert bool(jnp.all(jnp.isfinite(out)))

    ref = jax.block_until_ready(mm_gcn_reference(params, a, v, l, dia_len, qmask, nhidden))
    max_err = float(jnp.max(jnp.abs(out - ref)))
    assert max_err < 0.1, max_err    # bf16 MXU operands + acos polynomial tolerance

    print("KERNEL_OK")
</pallas_src>

<mosaic_0001>
module attributes {stable_mosaic.version = 11 : i64} {
  func.func @_prep_kernel(%arg0: i32, %arg1: memref<8x64xf32, #tpu.memory_space<vmem>>, %arg2: memref<8x64xf32, #tpu.memory_space<vmem>>, %arg3: memref<8x64xf32, #tpu.memory_space<vmem>>, %arg4: memref<8x64xf32, #tpu.memory_space<vmem>>, %arg5: memref<3x64xf32, #tpu.memory_space<vmem>>, %arg6: memref<64x128xf32, #tpu.memory_space<vmem>>, %arg7: memref<24x64xf32, #tpu.memory_space<vmem>>, %arg8: memref<24x128xbf16, #tpu.memory_space<vmem>>) attributes {dimension_semantics = [#tpu.dimension_semantics<arbitrary>], iteration_bounds = array<i64: 1>, scalar_prefetch = 0 : i64, scratch_operands = 0 : i64, tpu.core_type = #tpu.core_type<tc>, window_params = [{pipeline_mode = #tpu.pipeline_mode<synchronous>, transform_indices = @transform_0, window_bounds = array<i64: 8, 64>}, {pipeline_mode = #tpu.pipeline_mode<synchronous>, transform_indices = @transform_1, window_bounds = array<i64: 8, 64>}, {pipeline_mode = #tpu.pipeline_mode<synchronous>, transform_indices = @transform_2, window_bounds = array<i64: 8, 64>}, {pipeline_mode = #tpu.pipeline_mode<synchronous>, transform_indices = @transform_3, window_bounds = array<i64: 8, 64>}, {pipeline_mode = #tpu.pipeline_mode<synchronous>, transform_indices = @transform_4, window_bounds = array<i64: 3, 64>}, {pipeline_mode = #tpu.pipeline_mode<synchronous>, transform_indices = @transform_5, window_bounds = array<i64: 64, 128>}, {pipeline_mode = #tpu.pipeline_mode<synchronous>, transform_indices = @transform_6, window_bounds = array<i64: 24, 64>}, {pipeline_mode = #tpu.pipeline_mode<synchronous>, transform_indices = @transform_7, window_bounds = array<i64: 24, 128>}]} {
    %c0 = arith.constant 0 : index
    %c0_0 = arith.constant 0 : index
    %0 = vector.load %arg5[%c0, %c0_0] : memref<3x64xf32, #tpu.memory_space<vmem>>, vector<3x64xf32>
    %c0_1 = arith.constant 0 : index
    %c0_2 = arith.constant 0 : index
    %1 = vector.load %arg6[%c0_1, %c0_2] : memref<64x128xf32, #tpu.memory_space<vmem>>, vector<64x128xf32>
    %c0_3 = arith.constant 0 : index
    %c0_4 = arith.constant 0 : index
    %2 = vector.load %arg1[%c0_3, %c0_4] : memref<8x64xf32, #tpu.memory_space<vmem>>, vector<8x64xf32>
    %3 = vector.extract_strided_slice %0 {offsets = [0, 0], sizes = [1, 64], strides = [1, 1]} : vector<3x64xf32> to vector<1x64xf32>
    %4 = vector.broadcast %3 : vector<1x64xf32> to vector<8x64xf32>
    %5 = arith.addf %2, %4 : vector<8x64xf32>
    %c0_5 = arith.constant 0 : index
    %c0_6 = arith.constant 0 : index
    %6 = vector.load %arg2[%c0_5, %c0_6] : memref<8x64xf32, #tpu.memory_space<vmem>>, vector<8x64xf32>
    %7 = vector.extract_strided_slice %0 {offsets = [1, 0], sizes = [1, 64], strides = [1, 1]} : vector<3x64xf32> to vector<1x64xf32>
    %8 = vector.broadcast %7 : vector<1x64xf32> to vector<8x64xf32>
    %9 = arith.addf %6, %8 : vector<8x64xf32>
    %c0_7 = arith.constant 0 : index
    %c0_8 = arith.constant 0 : index
    %10 = vector.load %arg3[%c0_7, %c0_8] : memref<8x64xf32, #tpu.memory_space<vmem>>, vector<8x64xf32>
    %c0_9 = arith.constant 0 : index
    %c0_10 = arith.constant 0 : index
    %11 = vector.load %arg4[%c0_9, %c0_10] : memref<8x64xf32, #tpu.memory_space<vmem>>, vector<8x64xf32>
    %12 = arith.addf %10, %11 : vector<8x64xf32>
    %13 = vector.extract_strided_slice %0 {offsets = [2, 0], sizes = [1, 64], strides = [1, 1]} : vector<3x64xf32> to vector<1x64xf32>
    %14 = vector.broadcast %13 : vector<1x64xf32> to vector<8x64xf32>
    %15 = arith.addf %12, %14 : vector<8x64xf32>
    %16 = arith.mulf %5, %5 : vector<8x64xf32>
    %cst = arith.constant dense<0.000000e+00> : vector<8xf32>
    %17 = vector.multi_reduction <add>, %16, %cst [1] : vector<8x64xf32> to vector<8xf32>
    %18 = vector.shape_cast %17 : vector<8xf32> to vector<8x1xf32>
    %cst_11 = arith.constant 9.99999996E-13 : f32
    %19 = vector.broadcast %cst_11 : f32 to vector<8x1xf32>
    %20 = arith.addf %18, %19 : vector<8x1xf32>
    %21 = math.rsqrt %20 : vector<8x1xf32>
    %22 = vector.broadcast %21 : vector<8x1xf32> to vector<8x64xf32>
    %23 = arith.mulf %5, %22 : vector<8x64xf32>
    %c0_12 = arith.constant 0 : index
    %c0_13 = arith.constant 0 : index
    %24 = vector.load %arg7[%c0_12, %c0_13] : memref<24x64xf32, #tpu.memory_space<vmem>>, vector<8x64xf32>
    tpu.vector_store %arg7[%c0_12, %c0_13], %23 {strides = array<i32>} : memref<24x64xf32, #tpu.memory_space<vmem>>, vector<8x64xf32>,
    %cst_14 = arith.constant dense<0.000000e+00> : vector<8x128xf32>
    %25 = tpu.matmul %5, %1, %cst_14 {dimension_numbers = #tpu.dot_dimension_numbers<[1], [0], [0], [1], [0, 0, 1, 1], [], []>} : vector<8x64xf32>, vector<64x128xf32>, vector<8x128xf32> -> vector<8x128xf32>
    %26 = arith.truncf %25 : vector<8x128xf32> to vector<8x128xbf16>
    %c0_15 = arith.constant 0 : index
    %c0_16 = arith.constant 0 : index
    %27 = vector.load %arg8[%c0_15, %c0_16] : memref<24x128xbf16, #tpu.memory_space<vmem>>, vector<8x128xbf16>
    tpu.vector_store %arg8[%c0_15, %c0_16], %26 {strides = array<i32>} : memref<24x128xbf16, #tpu.memory_space<vmem>>, vector<8x128xbf16>,
    %28 = arith.mulf %9, %9 : vector<8x64xf32>
    %cst_17 = arith.constant dense<0.000000e+00> : vector<8xf32>
    %29 = vector.multi_reduction <add>, %28, %cst_17 [1] : vector<8x64xf32> to vector<8xf32>
    %30 = vector.shape_cast %29 : vector<8xf32> to vector<8x1xf32>
    %cst_18 = arith.constant 9.99999996E-13 : f32
    %31 = vector.broadcast %cst_18 : f32 to vector<8x1xf32>
    %32 = arith.addf %30, %31 : vector<8x1xf32>
    %33 = math.rsqrt %32 : vector<8x1xf32>
    %34 = vector.broadcast %33 : vector<8x1xf32> to vector<8x64xf32>
    %35 = arith.mulf %9, %34 : vector<8x64xf32>
    %c8 = arith.constant 8 : index
    %c0_19 = arith.constant 0 : index
    %36 = vector.load %arg7[%c8, %c0_19] : memref<24x64xf32, #tpu.memory_space<vmem>>, vector<8x64xf32>
    tpu.vector_store %arg7[%c8, %c0_19], %35 {strides = array<i32>} : memref<24x64xf32, #tpu.memory_space<vmem>>, vector<8x64xf32>,
    %cst_20 = arith.constant dense<0.000000e+00> : vector<8x128xf32>
    %37 = tpu.matmul %9, %1, %cst_20 {dimension_numbers = #tpu.dot_dimension_numbers<[1], [0], [0], [1], [0, 0, 1, 1], [], []>} : vector<8x64xf32>, vector<64x128xf32>, vector<8x128xf32> -> vector<8x128xf32>
    %38 = arith.truncf %37 : vector<8x128xf32> to vector<8x128xbf16>
    %c8_21 = arith.constant 8 : index
    %c0_22 = arith.constant 0 : index
    %39 = vector.load %arg8[%c8_21, %c0_22] : memref<24x128xbf16, #tpu.memory_space<vmem>>, vector<8x128xbf16>
    tpu.vector_store %arg8[%c8_21, %c0_22], %38 {strides = array<i32>} : memref<24x128xbf16, #tpu.memory_space<vmem>>, vector<8x128xbf16>,
    %40 = arith.mulf %15, %15 : vector<8x64xf32>
    %cst_23 = arith.constant dense<0.000000e+00> : vector<8xf32>
    %41 = vector.multi_reduction <add>, %40, %cst_23 [1] : vector<8x64xf32> to vector<8xf32>
    %42 = vector.shape_cast %41 : vector<8xf32> to vector<8x1xf32>
    %cst_24 = arith.constant 9.99999996E-13 : f32
    %43 = vector.broadcast %cst_24 : f32 to vector<8x1xf32>
    %44 = arith.addf %42, %43 : vector<8x1xf32>
    %45 = math.rsqrt %44 : vector<8x1xf32>
    %46 = vector.broadcast %45 : vector<8x1xf32> to vector<8x64xf32>
    %47 = arith.mulf %15, %46 : vector<8x64xf32>
    %c16 = arith.constant 16 : index
    %c0_25 = arith.constant 0 : index
    %48 = vector.load %arg7[%c16, %c0_25] : memref<24x64xf32, #tpu.memory_space<vmem>>, vector<8x64xf32>
    tpu.vector_store %arg7[%c16, %c0_25], %47 {strides = array<i32>} : memref<24x64xf32, #tpu.memory_space<vmem>>, vector<8x64xf32>,
    %cst_26 = arith.constant dense<0.000000e+00> : vector<8x128xf32>
    %49 = tpu.matmul %15, %1, %cst_26 {dimension_numbers = #tpu.dot_dimension_numbers<[1], [0], [0], [1], [0, 0, 1, 1], [], []>} : vector<8x64xf32>, vector<64x128xf32>, vector<8x128xf32> -> vector<8x128xf32>
    %50 = arith.truncf %49 : vector<8x128xf32> to vector<8x128xbf16>
    %c16_27 = arith.constant 16 : index
    %c0_28 = arith.constant 0 : index
    %51 = vector.load %arg8[%c16_27, %c0_28] : memref<24x128xbf16, #tpu.memory_space<vmem>>, vector<8x128xbf16>
    tpu.vector_store %arg8[%c16_27, %c0_28], %50 {strides = array<i32>} : memref<24x128xbf16, #tpu.memory_space<vmem>>, vector<8x128xbf16>,
    return
  }
  func.func @transform_0(%arg0: i32) -> (i32, i32) {
    %c0_i32 = arith.constant 0 : i32
    %c0_i32_0 = arith.constant 0 : i32
    %c0_i32_1 = arith.constant 0 : i32
    return %c0_i32, %c0_i32_0 : i32, i32
  }
  func.func @transform_1(%arg0: i32) -> (i32, i32) {
    %c0_i32 = arith.constant 0 : i32
    %c0_i32_0 = arith.constant 0 : i32
    %c0_i32_1 = arith.constant 0 : i32
    return %c0_i32, %c0_i32_0 : i32, i32
  }
  func.func @transform_2(%arg0: i32) -> (i32, i32) {
    %c0_i32 = arith.constant 0 : i32
    %c0_i32_0 = arith.constant 0 : i32
    %c0_i32_1 = arith.constant 0 : i32
    return %c0_i32, %c0_i32_0 : i32, i32
  }
  func.func @transform_3(%arg0: i32) -> (i32, i32) {
    %c0_i32 = arith.constant 0 : i32
    %c0_i32_0 = arith.constant 0 : i32
    %c0_i32_1 = arith.constant 0 : i32
    return %c0_i32, %c0_i32_0 : i32, i32
  }
  func.func @transform_4(%arg0: i32) -> (i32, i32) {
    %c0_i32 = arith.constant 0 : i32
    %c0_i32_0 = arith.constant 0 : i32
    %c0_i32_1 = arith.constant 0 : i32
    return %c0_i32, %c0_i32_0 : i32, i32
  }
  func.func @transform_5(%arg0: i32) -> (i32, i32) {
    %c0_i32 = arith.constant 0 : i32
    %c0_i32_0 = arith.constant 0 : i32
    %c0_i32_1 = arith.constant 0 : i32
    return %c0_i32, %c0_i32_0 : i32, i32
  }
  func.func @transform_6(%arg0: i32) -> (i32, i32) {
    %c0_i32 = arith.constant 0 : i32
    %c0_i32_0 = arith.constant 0 : i32
    %c0_i32_1 = arith.constant 0 : i32
    return %c0_i32, %c0_i32_0 : i32, i32
  }
  func.func @transform_7(%arg0: i32) -> (i32, i32) {
    %c0_i32 = arith.constant 0 : i32
    %c0_i32_0 = arith.constant 0 : i32
    %c0_i32_1 = arith.constant 0 : i32
    return %c0_i32, %c0_i32_0 : i32, i32
  }
}

</mosaic_0001>

<llo_original>
// kernel: tpu_custom_call.1
$region0: #{tpu_custom_call.1}
  #allocation0 [shape = 'u32[]', space=smem, size = 0x4, offset = 0x4, fixed_abs, tag = 'smem constant byte address 0x4 - core index']
  #allocation1 [shape = 'u32[144,128]{1,0:T(1,128)}', space=vmem, size = 0x12000, scoped, tag = 'internal scratch']
  %s0 = inlined_call_operand.hbm [shape: f32[8,64], index: 0, kind: input, shape index: {}]
  %s1 = inlined_call_operand.hbm [shape: f32[8,64], index: 1, kind: input, shape index: {}]
  %s2 = inlined_call_operand.hbm [shape: f32[8,64], index: 2, kind: input, shape index: {}]
  %s3 = inlined_call_operand.vmem [shape: f32[8,64], index: 3, kind: input, shape index: {}]
  %s4 = inlined_call_operand.vmem [shape: f32[3,64], index: 4, kind: input, shape index: {}]
  %s5 = inlined_call_operand.hbm [shape: f32[64,128], index: 5, kind: input, shape index: {}]
  %s6 = inlined_call_operand.hbm [shape: f32[24,64], index: 6, kind: output, shape index: {0}]
  %s7 = inlined_call_operand.hbm [shape: bf16[24,128], index: 7, kind: output, shape index: {1}]
  %8 = xla_tuple %s6, %s7
  %s9 = sld [smem:[#allocation0]]
  $region58: #{tpu_custom_call.1} parent=0
    _
  %s11 = ssub.s32 1, %s9
  %s12 = scalar_select 0, %s11, %s9
  $region1: #{tpu_custom_call.1} parent=0
    #allocation2 [shape = 'u8[4096]{0}', space=vmem, size = 0x1000, scoped, tag = 'input window, operand 0, single buffered']
    #allocation3 [shape = 's32[1]{0}', space=sflag, size = 0x4, scoped, tag = 'scoped memory for tpu_custom_call.1']
    #allocation4 [shape = 's32[1]{0}', space=sflag, size = 0x4, scoped, tag = 'scoped memory for tpu_custom_call.1']
    #allocation5 [shape = 'u8[4096]{0}', space=vmem, size = 0x1000, scoped, tag = 'input window, operand 1, single buffered']
    #allocation6 [shape = 's32[1]{0}', space=sflag, size = 0x4, scoped, tag = 'scoped memory for tpu_custom_call.1']
    #allocation7 [shape = 'u8[4096]{0}', space=vmem, size = 0x1000, scoped, tag = 'input window, operand 2, single buffered']
    #allocation8 [shape = 'u8[32768]{0}', space=vmem, size = 0x8000, scoped, tag = 'input window, operand 5, single buffered']
    #allocation9 [shape = 's32[1]{0}', space=sflag, size = 0x4, scoped, tag = 'scoped memory for tpu_custom_call.1']
    #allocation10 [shape = 'u8[12288]{0}', space=vmem, size = 0x3000, scoped, tag = 'output window, operand 0, single buffered']
    #allocation11 [shape = 'u8[6144]{0}', space=vmem, size = 0x1800, scoped, tag = 'output window, operand 1, single buffered']
    #allocation12 [shape = 's32[1]{0}', space=sflag, size = 0x4, scoped, tag = 'scoped memory for tpu_custom_call.1']
    %13 = vsyncpa [#allocation3], 0
    %14 = vsyncpa [#allocation6], 0
    %15 = vsyncpa [#allocation9], 0
    %16 = vsyncpa [#allocation4], 0
    %17 = vsyncpa [#allocation12], 0
    // Predicated region
    $region2: #{tpu_custom_call.1} parent=1 // pred_check
      _
    $region3: #{tpu_custom_call.1} parent=1 // pred_check_branch
      %19 = sbr.rel (0) target = $region5
    $region4: #{tpu_custom_call.1} parent=1 // pred_region
      %s21 = ssub.s32 128, 128
      %22 = vsyncadd [#allocation3], %s21
      %s24 = sshll.u32 [#allocation2], 4
      %s25 = int_to_ptr.vmem [resolvable:$true] %s24
      %27 = dma.hbm_to_vmem [thread:$0]  %s0, 128, %s25, [#allocation3]
    $region5: #{tpu_custom_call.1} parent=1 // pred_fallthru
      _
    // Predicated region
    $region6: #{tpu_custom_call.1} parent=1 // pred_check
      _
    $region7: #{tpu_custom_call.1} parent=1 // pred_check_branch
      %29 = sbr.rel (0) target = $region9
    $region8: #{tpu_custom_call.1} parent=1 // pred_region
      %s31 = ssub.s32 128, 128
      %32 = vsyncadd [#allocation6], %s31
      %s34 = sshll.u32 [#allocation5], 4
      %s35 = int_to_ptr.vmem [resolvable:$true] %s34
      %37 = dma.hbm_to_vmem [thread:$0]  %s1, 128, %s35, [#allocation6]
    $region9: #{tpu_custom_call.1} parent=1 // pred_fallthru
      _
    // Predicated region
    $region10: #{tpu_custom_call.1} parent=1 // pred_check
      _
    $region11: #{tpu_custom_call.1} parent=1 // pred_check_branch
      %39 = sbr.rel (0) target = $region13
    $region12: #{tpu_custom_call.1} parent=1 // pred_region
      %s41 = ssub.s32 128, 128
      %42 = vsyncadd [#allocation6], %s41
      %s44 = sshll.u32 [#allocation7], 4
      %s45 = int_to_ptr.vmem [resolvable:$true] %s44
      %47 = dma.hbm_to_vmem [thread:$0]  %s2, 128, %s45, [#allocation6]
    $region13: #{tpu_custom_call.1} parent=1 // pred_fallthru
      _
    // Predicated region
    $region14: #{tpu_custom_call.1} parent=1 // pred_check
      _
    $region15: #{tpu_custom_call.1} parent=1 // pred_check_branch
      %49 = sbr.rel (0) target = $region17
    $region16: #{tpu_custom_call.1} parent=1 // pred_region
      _
    $region17: #{tpu_custom_call.1} parent=1 // pred_fallthru
      _
    // Predicated region
    $region18: #{tpu_custom_call.1} parent=1 // pred_check
      _
    $region19: #{tpu_custom_call.1} parent=1 // pred_check_branch
      %51 = sbr.rel (0) target = $region21
    $region20: #{tpu_custom_call.1} parent=1 // pred_region
      _
    $region21: #{tpu_custom_call.1} parent=1 // pred_fallthru
      _
    // Predicated region
    $region22: #{tpu_custom_call.1} parent=1 // pred_check
      _
    $region23: #{tpu_custom_call.1} parent=1 // pred_check_branch
      %53 = sbr.rel (0) target = $region25
    $region24: #{tpu_custom_call.1} parent=1 // pred_region
      %s55 = ssub.s32 1024, 1024
      %56 = vsyncadd [#allocation9], %s55
      %s57 = sshll.u32 [#allocation8], 4
      %s58 = int_to_ptr.vmem [resolvable:$true] %s57
      %63 = dma.hbm_to_vmem [thread:$0]  %s5, 1024, %s58, [#allocation9], 128, 128, 8
    $region25: #{tpu_custom_call.1} parent=1 // pred_fallthru
      _
    // Predicated region
    $region26: #{tpu_custom_call.1} parent=1 // pred_check
      _
    $region27: #{tpu_custom_call.1} parent=1 // pred_check_branch
      %65 = sbr.rel (0) target = $region29
    $region28: #{tpu_custom_call.1} parent=1 // pred_region
      %66 = dma.done [#allocation3], 128
    $region29: #{tpu_custom_call.1} parent=1 // pred_fallthru
      _
    // Predicated region
    $region30: #{tpu_custom_call.1} parent=1 // pred_check
      _
    $region31: #{tpu_custom_call.1} parent=1 // pred_check_branch
      %68 = sbr.rel (0) target = $region33
    $region32: #{tpu_custom_call.1} parent=1 // pred_region
      %69 = dma.done [#allocation6], 128
    $region33: #{tpu_custom_call.1} parent=1 // pred_fallthru
      _
    // Predicated region
    $region34: #{tpu_custom_call.1} parent=1 // pred_check
      _
    $region35: #{tpu_custom_call.1} parent=1 // pred_check_branch
      %71 = sbr.rel (0) target = $region37
    $region36: #{tpu_custom_call.1} parent=1 // pred_region
      %72 = dma.done [#allocation6], 128
    $region37: #{tpu_custom_call.1} parent=1 // pred_fallthru
      _
    // Predicated region
    $region38: #{tpu_custom_call.1} parent=1 // pred_check
      _
    $region39: #{tpu_custom_call.1} parent=1 // pred_check_branch
      %74 = sbr.rel (0) target = $region41
    $region40: #{tpu_custom_call.1} parent=1 // pred_region
      %75 = dma.done [#allocation9], 1024
    $region41: #{tpu_custom_call.1} parent=1 // pred_fallthru
      _
    %v76 = vld [vmem:[%s4] sm:$0x7]
    %v77 = vld [vmem:[#allocation8] sm:$0xff]
    %v78 = vld [vmem:[#allocation8 + $0x8] sm:$0xff]
    %v79 = vld [vmem:[#allocation8 + $0x10] sm:$0xff]
    %v80 = vld [vmem:[#allocation8 + $0x18] sm:$0xff]
    %v81 = vld [vmem:[#allocation8 + $0x20] sm:$0xff]
    %v82 = vld [vmem:[#allocation8 + $0x28] sm:$0xff]
    %v83 = vld [vmem:[#allocation8 + $0x30] sm:$0xff]
    %v84 = vld [vmem:[#allocation8 + $0x38] sm:$0xff]
    %v85 = vld [vmem:[#allocation2] sm:$0xff]
    %v86 = vlaneseq
    %v87 = vshrl.u32 %v86, 7
    %v88 = vsub.s32 0, %v87
    %v89 = vrot.slane %v76, %v88
    %v90 = vadd.f32 %v85, %v89
    %v91 = vld [vmem:[#allocation5] sm:$0xff]
    %v92 = vlaneseq
    %v93 = vshrl.u32 %v92, 7
    %v94 = vsub.s32 1, %v93
    %v95 = vrot.slane %v76, %v94
    %v96 = vadd.f32 %v91, %v95
    %v97 = vld [vmem:[#allocation7] sm:$0xff]
    %v98 = vld [vmem:[%s3] sm:$0xff]
    %v99 = vadd.f32 %v97, %v98
    %v100 = vlaneseq
    %v101 = vshrl.u32 %v100, 7
    %v102 = vsub.s32 2, %v101
    %v103 = vrot.slane %v76, %v102
    %v104 = vadd.f32 %v99, %v103
    %v105 = vmul.f32 %v90, %v90
    %vm106 = vcmask 523264
    %v107 = vsel %vm106, %v105, 0.0
    %108 = vadd.xlane.f32.xlu0 %v107
    %v109 = vpop.xlane.xlu0 %108
    %v110 = vadd.f32 %v109, 1e-12
    %v111 = vrsqrt.pop %v110
    %v112 = vmul.f32 %v90, %v111
    %113 = vst.msk [vmem:[#allocation10] sm:$0xff] %vm106, %v112
    %v115 = vsel %vm106, %v90, 0
    %117 = vmatprep.subr.mxu0 0.0
    %118 = vmatpush1.msra.mxu0 %v77
    %119 = vmatprep.subr.mxu0 0.0
    %120 = vmatpush1.msra.mxu0 %v78
    %121 = vmatprep.subr.mxu0 0.0
    %122 = vmatpush1.msra.mxu0 %v79
    %123 = vmatprep.subr.mxu0 0.0
    %124 = vmatpush1.msra.mxu0 %v80
    %125 = vmatprep.subr.mxu0 0.0
    %126 = vmatpush1.msra.mxu0 %v81
    %127 = vmatprep.subr.mxu0 0.0
    %128 = vmatpush1.msra.mxu0 %v82
    %129 = vmatprep.subr.mxu0 0.0
    %130 = vmatpush1.msra.mxu0 %v83
    %131 = vmatprep.subr.mxu0 0.0
    %132 = vmatpush1.msra.mxu0 %v84
    %133 = vmatprep.subr.mxu0 0.0
    %134 = vmatpush1.msra.mxu0 0.0
    %135 = vmatprep.subr.mxu0 0.0
    %136 = vmatpush1.msra.mxu0 0.0
    %137 = vmatprep.subr.mxu0 0.0
    %138 = vmatpush1.msra.mxu0 0.0
    %139 = vmatprep.subr.mxu0 0.0
    %140 = vmatpush1.msra.mxu0 0.0
    %141 = vmatprep.subr.mxu0 0.0
    %142 = vmatpush1.msra.mxu0 0.0
    %143 = vmatprep.subr.mxu0 0.0
    %144 = vmatpush1.msra.mxu0 0.0
    %145 = vmatprep.subr.mxu0 0.0
    %146 = vmatpush1.msra.mxu0 0.0
    %147 = vmatprep.subr.mxu0 0.0
    %148 = vmatpush1.msra.mxu0 0.0
    %149 = vmatprep.subr.mxu0 0.0
    %150 = vmatpush1.msra.mxu0 0.0
    %151 = vmatprep.subr.mxu0 0.0
    %152 = vmatpush1.msra.mxu0 0.0
    %153 = vmatprep.subr.mxu0 0.0
    %154 = vmatpush1.msra.mxu0 0.0
    %155 = vmatprep.subr.mxu0 0.0
    %156 = vmatpush1.msra.mxu0 0.0
    %157 = vmatprep.subr.mxu0 0.0
    %158 = vmatpush1.msra.mxu0 0.0
    %159 = vmatprep.subr.mxu0 0.0
    %160 = vmatpush1.msra.mxu0 0.0
    %161 = vmatprep.subr.mxu0 0.0
    %162 = vmatpush1.msra.mxu0 0.0
    %163 = vmatprep.subr.mxu0 0.0
    %164 = vmatpush1.msra.mxu0 0.0
    %165 = vmatprep.subr.mxu0 0.0
    %166 = vmatpush1.msra.mxu0 0.0
    %167 = vmatprep.subr.mxu0 0.0
    %168 = vmatpush1.msra.mxu0 0.0
    %169 = vmatprep.subr.mxu0 0.0
    %170 = vmatpush1.msra.mxu0 0.0
    %171 = vmatprep.subr.mxu0 0.0
    %172 = vmatpush1.msra.mxu0 0.0
    %173 = vmatprep.subr.mxu0 0.0
    %174 = vmatpush1.msra.mxu0 0.0
    %175 = vmatprep.subr.mxu0 0.0
    %176 = vmatpush1.msra.mxu0 0.0
    %177 = vmatprep.subr.mxu0 0.0
    %178 = vmatpush1.msra.mxu0 0.0
    %179 = vmatprep.subr.mxu0 0.0
    %180 = vmatpush1.msra.mxu0 0.0
    %181 = vmatprep.mubr.f32.mxu0 0.0
    %182 = vmatmul.mubr.f32.gmra.mrb[0].mxu0 %v115
    %v183 = vpop.f32.mrb[0].mxu0
    %v184 = vadd.f32 0.0, %v183
    %v185 = vpop.f32.mrb[0].mxu0
    %186 = vdwg.mxu0
    %v187 = vpack.c.bf16 %v184, %v184
    %188 = vst [vmem:[#allocation11] sm:$0xf] %v187
    %v189 = vmul.f32 %v96, %v96
    %v190 = vsel %vm106, %v189, 0.0
    %191 = vadd.xlane.f32.xlu0 %v190
    %v192 = vpop.xlane.xlu0 %191
    %v193 = vadd.f32 %v192, 1e-12
    %v194 = vrsqrt.pop %v193
    %v195 = vmul.f32 %v96, %v194
    %196 = vst.msk [vmem:[#allocation10 + $0x8] sm:$0xff] %vm106, %v195
    %v198 = vsel %vm106, %v96, 0
    %200 = vmatprep.subr.mxu0 0.0
    %201 = vmatpush1.msra.mxu0 %v77
    %202 = vmatprep.subr.mxu0 0.0
    %203 = vmatpush1.msra.mxu0 %v78
    %204 = vmatprep.subr.mxu0 0.0
    %205 = vmatpush1.msra.mxu0 %v79
    %206 = vmatprep.subr.mxu0 0.0
    %207 = vmatpush1.msra.mxu0 %v80
    %208 = vmatprep.subr.mxu0 0.0
    %209 = vmatpush1.msra.mxu0 %v81
    %210 = vmatprep.subr.mxu0 0.0
    %211 = vmatpush1.msra.mxu0 %v82
    %212 = vmatprep.subr.mxu0 0.0
    %213 = vmatpush1.msra.mxu0 %v83
    %214 = vmatprep.subr.mxu0 0.0
    %215 = vmatpush1.msra.mxu0 %v84
    %216 = vmatprep.subr.mxu0 0.0
    %217 = vmatpush1.msra.mxu0 0.0
    %218 = vmatprep.subr.mxu0 0.0
    %219 = vmatpush1.msra.mxu0 0.0
    %220 = vmatprep.subr.mxu0 0.0
    %221 = vmatpush1.msra.mxu0 0.0
    %222 = vmatprep.subr.mxu0 0.0
    %223 = vmatpush1.msra.mxu0 0.0
    %224 = vmatprep.subr.mxu0 0.0
    %225 = vmatpush1.msra.mxu0 0.0
    %226 = vmatprep.subr.mxu0 0.0
    %227 = vmatpush1.msra.mxu0 0.0
    %228 = vmatprep.subr.mxu0 0.0
    %229 = vmatpush1.msra.mxu0 0.0
    %230 = vmatprep.subr.mxu0 0.0
    %231 = vmatpush1.msra.mxu0 0.0
    %232 = vmatprep.subr.mxu0 0.0
    %233 = vmatpush1.msra.mxu0 0.0
    %234 = vmatprep.subr.mxu0 0.0
    %235 = vmatpush1.msra.mxu0 0.0
    %236 = vmatprep.subr.mxu0 0.0
    %237 = vmatpush1.msra.mxu0 0.0
    %238 = vmatprep.subr.mxu0 0.0
    %239 = vmatpush1.msra.mxu0 0.0
    %240 = vmatprep.subr.mxu0 0.0
    %241 = vmatpush1.msra.mxu0 0.0
    %242 = vmatprep.subr.mxu0 0.0
    %243 = vmatpush1.msra.mxu0 0.0
    %244 = vmatprep.subr.mxu0 0.0
    %245 = vmatpush1.msra.mxu0 0.0
    %246 = vmatprep.subr.mxu0 0.0
    %247 = vmatpush1.msra.mxu0 0.0
    %248 = vmatprep.subr.mxu0 0.0
    %249 = vmatpush1.msra.mxu0 0.0
    %250 = vmatprep.subr.mxu0 0.0
    %251 = vmatpush1.msra.mxu0 0.0
    %252 = vmatprep.subr.mxu0 0.0
    %253 = vmatpush1.msra.mxu0 0.0
    %254 = vmatprep.subr.mxu0 0.0
    %255 = vmatpush1.msra.mxu0 0.0
    %256 = vmatprep.subr.mxu0 0.0
    %257 = vmatpush1.msra.mxu0 0.0
    %258 = vmatprep.subr.mxu0 0.0
    %259 = vmatpush1.msra.mxu0 0.0
    %260 = vmatprep.subr.mxu0 0.0
    %261 = vmatpush1.msra.mxu0 0.0
    %262 = vmatprep.subr.mxu0 0.0
    %263 = vmatpush1.msra.mxu0 0.0
    %264 = vmatprep.mubr.f32.mxu0 0.0
    %265 = vmatmul.mubr.f32.gmra.mrb[0].mxu0 %v198
    %v266 = vpop.f32.mrb[0].mxu0
    %v267 = vadd.f32 0.0, %v266
    %v268 = vpop.f32.mrb[0].mxu0
    %269 = vdwg.mxu0
    %v270 = vpack.c.bf16 %v267, %v267
    %271 = vst [vmem:[#allocation11 + $0x4] sm:$0xf] %v270
    %v272 = vmul.f32 %v104, %v104
    %v273 = vsel %vm106, %v272, 0.0
    %274 = vadd.xlane.f32.xlu0 %v273
    %v275 = vpop.xlane.xlu0 %274
    %v276 = vadd.f32 %v275, 1e-12
    %v277 = vrsqrt.pop %v276
    %v278 = vmul.f32 %v104, %v277
    %279 = vst.msk [vmem:[#allocation10 + $0x10] sm:$0xff] %vm106, %v278
    %v281 = vsel %vm106, %v104, 0
    %283 = vmatprep.subr.mxu0 0.0
    %284 = vmatpush1.msra.mxu0 %v77
    %285 = vmatprep.subr.mxu0 0.0
    %286 = vmatpush1.msra.mxu0 %v78
    %287 = vmatprep.subr.mxu0 0.0
    %288 = vmatpush1.msra.mxu0 %v79
    %289 = vmatprep.subr.mxu0 0.0
    %290 = vmatpush1.msra.mxu0 %v80
    %291 = vmatprep.subr.mxu0 0.0
    %292 = vmatpush1.msra.mxu0 %v81
    %293 = vmatprep.subr.mxu0 0.0
    %294 = vmatpush1.msra.mxu0 %v82
    %295 = vmatprep.subr.mxu0 0.0
    %296 = vmatpush1.msra.mxu0 %v83
    %297 = vmatprep.subr.mxu0 0.0
    %298 = vmatpush1.msra.mxu0 %v84
    %299 = vmatprep.subr.mxu0 0.0
    %300 = vmatpush1.msra.mxu0 0.0
    %301 = vmatprep.subr.mxu0 0.0
    %302 = vmatpush1.msra.mxu0 0.0
    %303 = vmatprep.subr.mxu0 0.0
    %304 = vmatpush1.msra.mxu0 0.0
    %305 = vmatprep.subr.mxu0 0.0
    %306 = vmatpush1.msra.mxu0 0.0
    %307 = vmatprep.subr.mxu0 0.0
    %308 = vmatpush1.msra.mxu0 0.0
    %309 = vmatprep.subr.mxu0 0.0
    %310 = vmatpush1.msra.mxu0 0.0
    %311 = vmatprep.subr.mxu0 0.0
    %312 = vmatpush1.msra.mxu0 0.0
    %313 = vmatprep.subr.mxu0 0.0
    %314 = vmatpush1.msra.mxu0 0.0
    %315 = vmatprep.subr.mxu0 0.0
    %316 = vmatpush1.msra.mxu0 0.0
    %317 = vmatprep.subr.mxu0 0.0
    %318 = vmatpush1.msra.mxu0 0.0
    %319 = vmatprep.subr.mxu0 0.0
    %320 = vmatpush1.msra.mxu0 0.0
    %321 = vmatprep.subr.mxu0 0.0
    %322 = vmatpush1.msra.mxu0 0.0
    %323 = vmatprep.subr.mxu0 0.0
    %324 = vmatpush1.msra.mxu0 0.0
    %325 = vmatprep.subr.mxu0 0.0
    %326 = vmatpush1.msra.mxu0 0.0
    %327 = vmatprep.subr.mxu0 0.0
    %328 = vmatpush1.msra.mxu0 0.0
    %329 = vmatprep.subr.mxu0 0.0
    %330 = vmatpush1.msra.mxu0 0.0
    %331 = vmatprep.subr.mxu0 0.0
    %332 = vmatpush1.msra.mxu0 0.0
    %333 = vmatprep.subr.mxu0 0.0
    %334 = vmatpush1.msra.mxu0 0.0
    %335 = vmatprep.subr.mxu0 0.0
    %336 = vmatpush1.msra.mxu0 0.0
    %337 = vmatprep.subr.mxu0 0.0
    %338 = vmatpush1.msra.mxu0 0.0
    %339 = vmatprep.subr.mxu0 0.0
    %340 = vmatpush1.msra.mxu0 0.0
    %341 = vmatprep.subr.mxu0 0.0
    %342 = vmatpush1.msra.mxu0 0.0
    %343 = vmatprep.subr.mxu0 0.0
    %344 = vmatpush1.msra.mxu0 0.0
    %345 = vmatprep.subr.mxu0 0.0
    %346 = vmatpush1.msra.mxu0 0.0
    %347 = vmatprep.mubr.f32.mxu0 0.0
    %348 = vmatmul.mubr.f32.gmra.mrb[0].mxu0 %v281
    %v349 = vpop.f32.mrb[0].mxu0
    %v350 = vadd.f32 0.0, %v349
    %v351 = vpop.f32.mrb[0].mxu0
    %352 = vdwg.mxu0
    %v353 = vpack.c.bf16 %v350, %v350
    %354 = vst [vmem:[#allocation11 + $0x8] sm:$0xf] %v353
    // Predicated region
    $region42: #{tpu_custom_call.1} parent=1 // pred_check
      _
    $region43: #{tpu_custom_call.1} parent=1 // pred_check_branch
      %356 = sbr.rel (0) target = $region45
    $region44: #{tpu_custom_call.1} parent=1 // pred_region
      %s358 = ssub.s32 384, 384
      %359 = vsyncadd [#allocation4], %s358
      %s360 = sshll.u32 [#allocation10], 4
      %s361 = int_to_ptr.vmem [resolvable:$true] %s360
      %366 = dma.vmem_to_hbm [thread:$0]  %s361, 384, %s6, [#allocation4], 128, 128, 8
    $region45: #{tpu_custom_call.1} parent=1 // pred_fallthru
      _
    // Predicated region
    $region46: #{tpu_custom_call.1} parent=1 // pred_check
      _
    $region47: #{tpu_custom_call.1} parent=1 // pred_check_branch
      %368 = sbr.rel (0) target = $region49
    $region48: #{tpu_custom_call.1} parent=1 // pred_region
      %s370 = ssub.s32 192, 192
      %371 = vsyncadd [#allocation12], %s370
      %s372 = sshll.u32 [#allocation11], 4
      %s373 = int_to_ptr.vmem [resolvable:$true] %s372
      %378 = dma.vmem_to_hbm [thread:$0]  %s373, 192, %s7, [#allocation12], 64, 64, 4
    $region49: #{tpu_custom_call.1} parent=1 // pred_fallthru
      _
    // Predicated region
    $region50: #{tpu_custom_call.1} parent=1 // pred_check
      _
    $region51: #{tpu_custom_call.1} parent=1 // pred_check_branch
      %380 = sbr.rel (0) target = $region53
    $region52: #{tpu_custom_call.1} parent=1 // pred_region
      %381 = dma.done [#allocation4], 384
    $region53: #{tpu_custom_call.1} parent=1 // pred_fallthru
      _
    // Predicated region
    $region54: #{tpu_custom_call.1} parent=1 // pred_check
      _
    $region55: #{tpu_custom_call.1} parent=1 // pred_check_branch
      %383 = sbr.rel (0) target = $region57
    $region56: #{tpu_custom_call.1} parent=1 // pred_region
      %384 = dma.done [#allocation12], 192
    $region57: #{tpu_custom_call.1} parent=1 // pred_fallthru
      _
    %385 = vsyncpa [#allocation3], 1
    %386 = vsyncpa [#allocation6], 1
    %387 = vsyncpa [#allocation9], 1
    %388 = vsyncpa [#allocation4], 1
    %389 = vsyncpa [#allocation12], 1

</llo_original>
